<compile_context>
chip_gen: v5e
topology: v5e:2x2
jax: 0.10.0
libtpu: 0.0.40
codegen_flags: <defaults>
</compile_context>

<pallas_src>
import jax
import jax.numpy as jnp
from jax.experimental import pallas as pl
from jax.experimental.pallas import tpu as pltpu


MIN_GRID_STEPS = 8  # enough steps for pipelining + megacore sharding


# ----------------------------------------------------------------------------
# Kernels
# ----------------------------------------------------------------------------

def _scale_kernel_nchw(x_ref, g_ref, b_ref, o_ref):
    # x_ref / o_ref: (n_block, c_block, hw_block); g_ref / b_ref: (c_block, 1) f32.
    x = x_ref[...].astype(jnp.float32)
    g = g_ref[...][None, :, :]          # (1, c_block, 1) -> broadcast over N and HW
    b = b_ref[...][None, :, :]
    o_ref[...] = (x * g + b).astype(o_ref.dtype)


def _scale_kernel_fused(x_ref, g_ref, b_ref, o_ref):
    # x_ref / o_ref: (n_block, l_block); g_ref / b_ref: (1, l_block) f32 (pre-broadcast).
    x = x_ref[...].astype(jnp.float32)
    o_ref[...] = (x * g_ref[...] + b_ref[...]).astype(o_ref.dtype)


# ----------------------------------------------------------------------------
# Tiling helpers
# ----------------------------------------------------------------------------

def _cdiv(a, b):
    return -(-a // b)


def _vmem_budget():
    """Total byte budget for the pipeline's double-buffered in/out/aux tiles,
    tuned per TPU generation (review: ~3 MiB/buffer v5e, ~8 v6e, ~10 v7x)."""
    try:
        kind = jax.devices()[0].device_kind.lower()
    except Exception:
        kind = ""
    if ("v5 lite" in kind) or ("v5e" in kind) or ("v5lite" in kind):
        per_buf = 3 << 20
    elif "v6" in kind:
        per_buf = 8 << 20
    elif "v7" in kind:
        per_buf = 10 << 20
    else:
        per_buf = 4 << 20
    # Safety clamp against physical VMEM if the query is available.
    try:
        cap = pltpu.get_tpu_info().vmem_capacity_bytes
        per_buf = min(per_buf, max(1 << 20, cap // 8))
    except Exception:
        pass
    return 4 * per_buf  # input + output, double-buffered


def _vmem_limit(step_bytes):
    # actual per-step buffer bytes + slack, clamped well under v7x's 64 MiB.
    return int(min(max(step_bytes + (4 << 20), 16 << 20), 56 << 20))


def _refine_min_steps(blocks, dims, units, order, min_steps=MIN_GRID_STEPS):
    """Shrink block sizes (axes tried in `order`) until the grid has at least
    `min_steps` steps or nothing can legally shrink.  units[ax] is the quantum
    the block must remain a positive multiple of; 0 means the axis is fixed."""
    blocks = list(blocks)

    def steps():
        s = 1
        for b, d in zip(blocks, dims):
            s *= _cdiv(d, b)
        return s

    changed = True
    while steps() < min_steps and changed:
        changed = False
        for ax in order:
            if steps() >= min_steps:
                break
            u, b = units[ax], blocks[ax]
            if u <= 0 or b <= u:
                continue
            nb = max(u, (b // 2 // u) * u)
            if nb < b:
                blocks[ax] = nb
                changed = True
    return tuple(blocks)


# ----------------------------------------------------------------------------
# Path A: HW is a multiple of 128 -> (N, C, HW) layout, gamma/beta as (C, 1)
# ----------------------------------------------------------------------------

def _scale_nchw(x, gamma, beta, N, C, HW, itemsize, pack, budget):
    x2 = x.reshape(N, C, HW)
    g2 = gamma.reshape(C, 1).astype(jnp.float32)
    b2 = beta.reshape(C, 1).astype(jnp.float32)

    xio = 2 * 2 * itemsize        # x in + out, double-buffered, per element
    aux_per_c = 2 * 2 * 128 * 4   # gamma + beta (c,1) tiles, lane-padded, double-buffered

    c_fixed = (C % 8 != 0)                                   # block must equal full C
    c_unit = 0 if c_fixed else (pack if C % pack == 0 else 8)
    c_min = C if c_fixed else c_unit

    # hw_block: keep the full (lane-dense) HW if it fits; otherwise a multiple of 128.
    if c_min * HW * xio + c_min * aux_per_c <= budget:
        hw_block = HW
    else:
        hw_max = max((budget - c_min * aux_per_c) // (c_min * xio), 128)
        hw_block = max(128, min((hw_max // 128) * 128, HW))

    # c_block: grow in dtype-pack multiples within budget.
    if c_fixed:
        c_block = C
    else:
        c_max = budget // (hw_block * xio + aux_per_c)
        c_block = max(c_unit, min((c_max // c_unit) * c_unit, C))

    # n_block: fill the remaining budget with batch rows.
    n_max = (budget - c_block * aux_per_c) // (c_block * hw_block * xio)
    n_block = max(1, min(N, n_max))

    # Guarantee enough grid steps for pipelining / megacore.
    n_block, c_block, hw_block = _refine_min_steps(
        (n_block, c_block, hw_block), (N, C, HW), (1, c_unit, 128), order=(0, 1, 2))

    grid = (_cdiv(C, c_block), _cdiv(HW, hw_block), _cdiv(N, n_block))
    step_bytes = n_block * c_block * hw_block * xio + c_block * aux_per_c

    # Grid order (c, hw, n): gamma/beta block index only changes on the outer
    # axis, so their tiny DMA is not re-issued on inner steps.
    out2 = pl.pallas_call(
        _scale_kernel_nchw,
        out_shape=jax.ShapeDtypeStruct((N, C, HW), x.dtype),
        grid_spec=pltpu.PrefetchScalarGridSpec(
            num_scalar_prefetch=0,
            grid=grid,
            in_specs=[
                pl.BlockSpec((n_block, c_block, hw_block), lambda c, s, n: (n, c, s)),
                pl.BlockSpec((c_block, 1), lambda c, s, n: (c, 0)),
                pl.BlockSpec((c_block, 1), lambda c, s, n: (c, 0)),
            ],
            out_specs=pl.BlockSpec((n_block, c_block, hw_block),
                                   lambda c, s, n: (n, c, s)),
        ),
        compiler_params=pltpu.CompilerParams(
            dimension_semantics=("parallel", "parallel", "parallel"),
            vmem_limit_bytes=_vmem_limit(step_bytes),
        ),
    )(x2, g2, b2)
    return out2.reshape(x.shape)


# ----------------------------------------------------------------------------
# Path B: HW not a multiple of 128 -> fused (N, C*HW) layout, lane-dense blocks
# ----------------------------------------------------------------------------

def _scale_fused(x, gamma, beta, N, C, HW, itemsize, pack, budget):
    L = C * HW
    x2 = x.reshape(N, L)
    g2 = jnp.repeat(gamma.astype(jnp.float32), HW).reshape(1, L)  # tiny XLA broadcast
    b2 = jnp.repeat(beta.astype(jnp.float32), HW).reshape(1, L)

    xio = 2 * 2 * itemsize       # x in + out, double-buffered, per element
    aux_per_l = 2 * 2 * 8 * 4    # gamma + beta (1,l) tiles, sublane-padded, double-buffered

    n_fixed = (N % 8 != 0)                                   # block must equal full N
    n_unit = 0 if n_fixed else (pack if N % pack == 0 else 8)
    l_fixed = (L < 128)                                      # block must equal full L
    l_unit = 0 if l_fixed else 128
    l_min = L if l_fixed else 128

    # n_block first (aux cost is independent of n, so batch rows are cheap leverage).
    if n_fixed:
        n_block = N
    else:
        n_max = max((budget - l_min * aux_per_l) // (l_min * xio), n_unit)
        n_block = max(n_unit, min((n_max // n_unit) * n_unit, N))

    # l_block: fused channel*spatial axis in multiples of 128 (or full L).
    if l_fixed:
        l_block = L
    else:
        l_max = max(budget // (n_block * xio + aux_per_l), 128)
        if l_max >= L:
            l_block = L
        else:
            l_block = max(128, min((l_max // 128) * 128, (L // 128) * 128))

    n_block, l_block = _refine_min_steps(
        (n_block, l_block), (N, L), (n_unit, l_unit), order=(0, 1))

    grid = (_cdiv(L, l_block), _cdiv(N, n_block))
    step_bytes = n_block * l_block * xio + l_block * aux_per_l

    out2 = pl.pallas_call(
        _scale_kernel_fused,
        out_shape=jax.ShapeDtypeStruct((N, L), x.dtype),
        grid_spec=pltpu.PrefetchScalarGridSpec(
            num_scalar_prefetch=0,
            grid=grid,
            in_specs=[
                pl.BlockSpec((n_block, l_block), lambda l, n: (n, l)),
                pl.BlockSpec((1, l_block), lambda l, n: (0, l)),
                pl.BlockSpec((1, l_block), lambda l, n: (0, l)),
            ],
            out_specs=pl.BlockSpec((n_block, l_block), lambda l, n: (n, l)),
        ),
        compiler_params=pltpu.CompilerParams(
            dimension_semantics=("parallel", "parallel"),
            vmem_limit_bytes=_vmem_limit(step_bytes),
        ),
    )(x2, g2, b2)
    return out2.reshape(x.shape)


# ----------------------------------------------------------------------------
# Public entry point
# ----------------------------------------------------------------------------

def scale_forward(x, gamma, beta):
    """Per-channel affine transform (NCHW): y[:, c] = x[:, c] * gamma[c] + beta[c]."""
    N, C, H, W = x.shape
    assert gamma.shape == (C,) and beta.shape == (C,)
    HW = H * W
    itemsize = jnp.dtype(x.dtype).itemsize
    pack = max(8, 32 // itemsize)     # packed sublane granularity: 8 f32 / 16 bf16 / 32 int8
    budget = _vmem_budget()

    if HW % 128 == 0:
        return _scale_nchw(x, gamma, beta, N, C, HW, itemsize, pack, budget)
    return _scale_fused(x, gamma, beta, N, C, HW, itemsize, pack, budget)


if __name__ == "__main__":
    key = jax.random.PRNGKey(0)
    kx, kg, kb, kx2, kg2, kb2 = jax.random.split(key, 6)

    # Primary shape (HW = 256, multiple of 128 -> (N, C, HW) path).
    N, C, H, W = 2, 4, 16, 16
    x = jax.random.normal(kx, (N, C, H, W), dtype=jnp.float32)
    gamma = jnp.ones((C,), jnp.float32) + 0.1 * jax.random.normal(kg, (C,), jnp.float32)
    beta = 0.1 * jax.random.normal(kb, (C,), jnp.float32)
    y = jax.block_until_ready(scale_forward(x, gamma, beta))
    y_ref = x * gamma[None, :, None, None] + beta[None, :, None, None]
    assert y.shape == x.shape and y.dtype == x.dtype
    assert jnp.allclose(y, y_ref, atol=1e-6, rtol=1e-6)

    # Secondary shape (HW = 196, NOT a multiple of 128 -> fused lane-dense path).
    N2, C2, H2, W2 = 2, 6, 14, 14
    x_b = jax.random.normal(kx2, (N2, C2, H2, W2), dtype=jnp.float32)
    gamma_b = jnp.ones((C2,), jnp.float32) + 0.1 * jax.random.normal(kg2, (C2,), jnp.float32)
    beta_b = 0.1 * jax.random.normal(kb2, (C2,), jnp.float32)
    y_b = jax.block_until_ready(scale_forward(x_b, gamma_b, beta_b))
    y_b_ref = x_b * gamma_b[None, :, None, None] + beta_b[None, :, None, None]
    assert jnp.allclose(y_b, y_b_ref, atol=1e-6, rtol=1e-6)

    print("KERNEL_OK")
</pallas_src>

<mosaic_0001>
module attributes {stable_mosaic.version = 11 : i64} {
  func.func @_scale_kernel_nchw(%arg0: i32, %arg1: i32, %arg2: i32, %arg3: memref<1x4x128xf32, #tpu.memory_space<vmem>>, %arg4: memref<4x1xf32, #tpu.memory_space<vmem>>, %arg5: memref<4x1xf32, #tpu.memory_space<vmem>>, %arg6: memref<1x4x128xf32, #tpu.memory_space<vmem>>) attributes {dimension_semantics = [#tpu.dimension_semantics<parallel>, #tpu.dimension_semantics<parallel>, #tpu.dimension_semantics<parallel>], iteration_bounds = array<i64: 1, 2, 2>, scalar_prefetch = 0 : i64, scratch_operands = 0 : i64, tpu.core_type = #tpu.core_type<tc>, window_params = [{transform_indices = @transform_0, window_bounds = array<i64: 1, 4, 128>}, {transform_indices = @transform_1, window_bounds = array<i64: 4, 1>}, {transform_indices = @transform_2, window_bounds = array<i64: 4, 1>}, {transform_indices = @transform_3, window_bounds = array<i64: 1, 4, 128>}]} {
    %c0 = arith.constant 0 : index
    %c0_0 = arith.constant 0 : index
    %c0_1 = arith.constant 0 : index
    %0 = vector.load %arg3[%c0, %c0_0, %c0_1] : memref<1x4x128xf32, #tpu.memory_space<vmem>>, vector<1x4x128xf32>
    %c0_2 = arith.constant 0 : index
    %c0_3 = arith.constant 0 : index
    %1 = vector.load %arg4[%c0_2, %c0_3] : memref<4x1xf32, #tpu.memory_space<vmem>>, vector<4x1xf32>
    %2 = vector.shape_cast %1 : vector<4x1xf32> to vector<1x4x1xf32>
    %c0_4 = arith.constant 0 : index
    %c0_5 = arith.constant 0 : index
    %3 = vector.load %arg5[%c0_4, %c0_5] : memref<4x1xf32, #tpu.memory_space<vmem>>, vector<4x1xf32>
    %4 = vector.shape_cast %3 : vector<4x1xf32> to vector<1x4x1xf32>
    %5 = vector.broadcast %2 : vector<1x4x1xf32> to vector<1x4x128xf32>
    %6 = arith.mulf %0, %5 : vector<1x4x128xf32>
    %7 = vector.broadcast %4 : vector<1x4x1xf32> to vector<1x4x128xf32>
    %8 = arith.addf %6, %7 : vector<1x4x128xf32>
    %c0_6 = arith.constant 0 : index
    %c0_7 = arith.constant 0 : index
    %c0_8 = arith.constant 0 : index
    %9 = vector.load %arg6[%c0_6, %c0_7, %c0_8] : memref<1x4x128xf32, #tpu.memory_space<vmem>>, vector<1x4x128xf32>
    tpu.vector_store %arg6[%c0_6, %c0_7, %c0_8], %8 {strides = array<i32>} : memref<1x4x128xf32, #tpu.memory_space<vmem>>, vector<1x4x128xf32>,
    return
  }
  func.func @transform_0(%arg0: i32, %arg1: i32, %arg2: i32) -> (i32, i32, i32) {
    %c0_i32 = arith.constant 0 : i32
    return %arg2, %arg0, %arg1 : i32, i32, i32
  }
  func.func @transform_1(%arg0: i32, %arg1: i32, %arg2: i32) -> (i32, i32) {
    %c0_i32 = arith.constant 0 : i32
    %c0_i32_0 = arith.constant 0 : i32
    return %arg0, %c0_i32 : i32, i32
  }
  func.func @transform_2(%arg0: i32, %arg1: i32, %arg2: i32) -> (i32, i32) {
    %c0_i32 = arith.constant 0 : i32
    %c0_i32_0 = arith.constant 0 : i32
    return %arg0, %c0_i32 : i32, i32
  }
  func.func @transform_3(%arg0: i32, %arg1: i32, %arg2: i32) -> (i32, i32, i32) {
    %c0_i32 = arith.constant 0 : i32
    return %arg2, %arg0, %arg1 : i32, i32, i32
  }
}

</mosaic_0001>

<llo_original>
// kernel: tpu_custom_call.1
$region0: #{tpu_custom_call.1}
  #allocation0 [shape = 'u32[]', space=smem, size = 0x4, offset = 0x4, fixed_abs, tag = 'smem constant byte address 0x4 - core index']
  #allocation1 [shape = 'u32[72,128]{1,0:T(1,128)}', space=vmem, size = 0x9000, scoped, tag = 'internal scratch']
  %s0 = inlined_call_operand.hbm [shape: f32[2,4,256], index: 0, kind: input, shape index: {}]
  %s1 = inlined_call_operand.vmem [shape: f32[4,1], index: 1, kind: input, shape index: {}]
  %s2 = inlined_call_operand.vmem [shape: f32[4,1], index: 2, kind: input, shape index: {}]
  %s3 = inlined_call_operand.hbm [shape: f32[2,4,256], index: 3, kind: output, shape index: {}]
  %s4 = sld [smem:[#allocation0]]
  $region49: #{tpu_custom_call.1} parent=0
    _
  %s6 = ssub.s32 1, %s4
  %s7 = scalar_select 0, %s6, %s4
  $region1: #{tpu_custom_call.1} parent=0
    #allocation2 [shape = 'u8[4096]{0}', space=vmem, size = 0x1000, scoped, tag = 'input window, operand 0']
    #allocation3 [shape = 's32[2]{0}', space=sflag, size = 0x8, scoped, tag = 'scoped memory for tpu_custom_call.1']
    #allocation4 [shape = 's32[2]{0}', space=sflag, size = 0x8, scoped, tag = 'scoped memory for tpu_custom_call.1']
    #allocation5 [shape = 'u8[4096]{0}', space=vmem, size = 0x1000, scoped, tag = 'output window, operand 0']
    %8 = vsyncpa [#allocation3], 0
    %s9 = scalar_lea.sflag [#allocation3], 1
    %10 = vsyncpa %s9, 0
    %11 = vsyncpa [#allocation4], 0
    %s12 = scalar_lea.sflag [#allocation4], 1
    %13 = vsyncpa %s12, 0
    loop: start=0, step=1, limit=6
    $region2: #{tpu_custom_call.1} parent=1 // loop_pre_header
      _
    $region3: #{tpu_custom_call.1} parent=1 // loop_header
      %s15 = sphi 0, %s19
      %p16 = scmp.ge.s32.totalorder %s15, 6
      %s22 = sphi 0, %s41
      %s23 = sphi 0, %s37
      %s24 = sphi 0, %s33
      %s25 = sphi 0, %s22
      %s26 = sphi 0, %s23
      %s27 = sphi 0, %s24
      %s28 = sphi 0, %s25
      %s29 = sphi 0, %s26
      %s30 = sphi 0, %s27
      %s48 = sphi 0, %s50
      %s51 = sphi 0, %s48
      %s52 = sphi 0, %s51
      %s68 = sphi 0, %s52
      %s74 = sphi 0, %s76
      %s77 = sphi 0, %s74
      %s78 = sphi 0, %s77
      %s94 = sphi 0, %s78
      %s100 = sphi 0, %s102
      %s103 = sphi 0, %s100
      %s104 = sphi 0, %s103
      %s120 = sphi 0, %s104
      %s130 = sphi 0, %s132
      %s133 = sphi 0, %s130
      %s134 = sphi 0, %s133
      %s150 = sphi 0, %s134
    $region4: #{tpu_custom_call.1} parent=1 // loop_header_branch
      %18 = sbr.rel (%p16) target = $region8
    $region5: #{tpu_custom_call.1} parent=1 // loop_body
      %s20 = ssub.s32 %s15, 1
      %s21 = ssub.s32 %s15, 2
      %s31 = sadd.s32 1, %s24
      %p32 = scmp.ge.s32.totalorder %s31, 2
      %s33 = scalar_select %p32, 0, %s31
      %s34 = sadd.s32 1, %s23
      %s35 = scalar_select %p32, %s34, %s23
      %p36 = scmp.ge.s32.totalorder %s35, 2
      %s37 = scalar_select %p36, 0, %s35
      %s38 = sadd.s32 1, %s22
      %s39 = scalar_select %p36, %s38, %s22
      %p40 = scmp.ge.s32.totalorder %s39, 1
      %s41 = scalar_select %p40, 0, %s39
      %s42 = ssub.s32 %s24, %s33
      %s43 = ssub.s32 %s22, %s41
      %s44 = sor.u32 %s42, %s43
      %s45 = ssub.s32 %s23, %s37
      %s46 = sor.u32 %s44, %s45
      %p47 = scmp.eq.s32.totalorder %s46, 0
      %s49 = sadd.s32 %s48, 1
      %s50 = scalar_select %p47, %s48, %s49
      %p53 = pneg %p47
      %p54 = scmp.eq.s32.totalorder %s15, 3
      %p55 = por %p53, %p54
      %p56 = scmp.ne.s32.totalorder %s48, %s51
      %p57 = scmp.eq.s32.totalorder %s15, 0
      %p58 = por %p56, %p57
      %p59 = scmp.ne.s32.totalorder %s48, %s51
      %p60 = scmp.eq.s32.totalorder %s20, 3
      %p61 = por %p59, %p60
      %p62 = scmp.ne.s32.totalorder %s51, %s52
      %p63 = scmp.eq.s32.totalorder %s20, 0
      %p64 = por %p62, %p63
      %p65 = scmp.ne.s32.totalorder %s51, %s52
      %p66 = scmp.eq.s32.totalorder %s21, 3
      %p67 = por %p65, %p66
      %p69 = scmp.ne.s32.totalorder %s52, %s68
      %p70 = scmp.eq.s32.totalorder %s21, 0
      %p71 = por %p69, %p70
      %s72 = ssub.s32 %s22, %s41
      %p73 = scmp.eq.s32.totalorder %s72, 0
      %s75 = sadd.s32 %s74, 1
      %s76 = scalar_select %p73, %s74, %s75
      %p79 = pneg %p73
      %p80 = scmp.eq.s32.totalorder %s15, 3
      %p81 = por %p79, %p80
      %p82 = scmp.ne.s32.totalorder %s74, %s77
      %p83 = scmp.eq.s32.totalorder %s15, 0
      %p84 = por %p82, %p83
      %p85 = scmp.ne.s32.totalorder %s74, %s77
      %p86 = scmp.eq.s32.totalorder %s20, 3
      %p87 = por %p85, %p86
      %p88 = scmp.ne.s32.totalorder %s77, %s78
      %p89 = scmp.eq.s32.totalorder %s20, 0
      %p90 = por %p88, %p89
      %p91 = scmp.ne.s32.totalorder %s77, %s78
      %p92 = scmp.eq.s32.totalorder %s21, 3
      %p93 = por %p91, %p92
      %p95 = scmp.ne.s32.totalorder %s78, %s94
      %p96 = scmp.eq.s32.totalorder %s21, 0
      %p97 = por %p95, %p96
      %s98 = ssub.s32 %s22, %s41
      %p99 = scmp.eq.s32.totalorder %s98, 0
      %s101 = sadd.s32 %s100, 1
      %s102 = scalar_select %p99, %s100, %s101
      %p105 = pneg %p99
      %p106 = scmp.eq.s32.totalorder %s15, 3
      %p107 = por %p105, %p106
      %p108 = scmp.ne.s32.totalorder %s100, %s103
      %p109 = scmp.eq.s32.totalorder %s15, 0
      %p110 = por %p108, %p109
      %p111 = scmp.ne.s32.totalorder %s100, %s103
      %p112 = scmp.eq.s32.totalorder %s20, 3
      %p113 = por %p111, %p112
      %p114 = scmp.ne.s32.totalorder %s103, %s104
      %p115 = scmp.eq.s32.totalorder %s20, 0
      %p116 = por %p114, %p115
      %p117 = scmp.ne.s32.totalorder %s103, %s104
      %p118 = scmp.eq.s32.totalorder %s21, 3
      %p119 = por %p117, %p118
      %p121 = scmp.ne.s32.totalorder %s104, %s120
      %p122 = scmp.eq.s32.totalorder %s21, 0
      %p123 = por %p121, %p122
      %s124 = ssub.s32 %s24, %s33
      %s125 = ssub.s32 %s22, %s41
      %s126 = sor.u32 %s124, %s125
      %s127 = ssub.s32 %s23, %s37
      %s128 = sor.u32 %s126, %s127
      %p129 = scmp.eq.s32.totalorder %s128, 0
      %s131 = sadd.s32 %s130, 1
      %s132 = scalar_select %p129, %s130, %s131
      %p135 = pneg %p129
      %p136 = scmp.eq.s32.totalorder %s15, 3
      %p137 = por %p135, %p136
      %p138 = scmp.ne.s32.totalorder %s130, %s133
      %p139 = scmp.eq.s32.totalorder %s15, 0
      %p140 = por %p138, %p139
      %p141 = scmp.ne.s32.totalorder %s130, %s133
      %p142 = scmp.eq.s32.totalorder %s20, 3
      %p143 = por %p141, %p142
      %p144 = scmp.ne.s32.totalorder %s133, %s134
      %p145 = scmp.eq.s32.totalorder %s20, 0
      %p146 = por %p144, %p145
      %p147 = scmp.ne.s32.totalorder %s133, %s134
      %p148 = scmp.eq.s32.totalorder %s21, 3
      %p149 = por %p147, %p148
      %p151 = scmp.ne.s32.totalorder %s134, %s150
      %p152 = scmp.eq.s32.totalorder %s21, 0
      %p153 = por %p151, %p152
      %p154 = scmp.le.s32.totalorder 1, %s15
      %p155 = scmp.lt.s32.totalorder %s15, 5
      %p156 = pnand %p154, %p155
      %p157 = pneg %p156
      // Predicated region
      $region9: #{tpu_custom_call.1} parent=5 // pred_check
        _
      $region10: #{tpu_custom_call.1} parent=5 // pred_check_branch
        %159 = sbr.rel (%p156) target = $region12
      $region11: #{tpu_custom_call.1} parent=5 // pred_region
        %s160 = ssub.s32 %s15, 1
        // Predicated region
        $region13: #{tpu_custom_call.1} parent=11 // pred_check
          %p161 = pneg %p90
        $region14: #{tpu_custom_call.1} parent=11 // pred_check_branch
          %163 = sbr.rel (%p161) target = $region16
        $region15: #{tpu_custom_call.1} parent=11 // pred_region
          %p164 = scmp.lt.s32.totalorder %s25, 0
          %s165 = scalar_select %p164, %s25, 0
          %s166 = smul.addr %s165, 4
          %s167 = scalar_lea.vmem %s1, %s166
        $region16: #{tpu_custom_call.1} parent=11 // pred_fallthru
          _
        // Predicated region
        $region17: #{tpu_custom_call.1} parent=11 // pred_check
          %p168 = pneg %p116
        $region18: #{tpu_custom_call.1} parent=11 // pred_check_branch
          %170 = sbr.rel (%p168) target = $region20
        $region19: #{tpu_custom_call.1} parent=11 // pred_region
          %p171 = scmp.lt.s32.totalorder %s25, 0
          %s172 = scalar_select %p171, %s25, 0
          %s173 = smul.addr %s172, 4
          %s174 = scalar_lea.vmem %s2, %s173
        $region20: #{tpu_custom_call.1} parent=11 // pred_fallthru
          _
      $region12: #{tpu_custom_call.1} parent=5 // pred_fallthru
        _
      %p175 = scmp.lt.s32.totalorder %s15, 4
      // Predicated region
      $region21: #{tpu_custom_call.1} parent=5 // pred_check
        %p176 = pneg %p175
      $region22: #{tpu_custom_call.1} parent=5 // pred_check_branch
        %178 = sbr.rel (%p176) target = $region24
      $region23: #{tpu_custom_call.1} parent=5 // pred_region
        // Predicated region
        $region25: #{tpu_custom_call.1} parent=23 // pred_check
          %p179 = pneg %p58
        $region26: #{tpu_custom_call.1} parent=23 // pred_check_branch
          %181 = sbr.rel (%p179) target = $region28
        $region27: #{tpu_custom_call.1} parent=23 // pred_region
          %s182 = sand.u32 %s48, 1
          %s183 = scalar_lea.sflag [#allocation3], %s182
          %s184 = sand.u32 %s48, 1
          %s185 = smul.addr %s184, 4
          %s186 = scalar_lea.vmem [#allocation2], %s185
          %188 = vsyncadd %s183, 0
          %s189 = smul.addr %s22, 2
          %s190 = sadd.s32 %s23, %s189
          %s191 = smul.addr %s24, 2
          %s192 = sadd.s32 %s190, %s191
          %s193 = smul.addr %s192, 4
          %s194 = scalar_lea.hbm %s0, %s193
          %s196 = sshll.u32 %s194, 4
          %s197 = int_to_ptr.hbm [resolvable:$true] %s196
          %s198 = sshll.u32 %s186, 4
          %s199 = int_to_ptr.vmem [resolvable:$true] %s198
          %201 = dma.hbm_to_vmem [thread:$0]  %s197, 64, %s199, %s183
        $region28: #{tpu_custom_call.1} parent=23 // pred_fallthru
          _
      $region24: #{tpu_custom_call.1} parent=5 // pred_fallthru
        _
      %p202 = scmp.le.s32.totalorder 1, %s15
      %p203 = scmp.lt.s32.totalorder %s15, 5
      %p204 = pnand %p202, %p203
      %p205 = pneg %p204
      // Predicated region
      $region29: #{tpu_custom_call.1} parent=5 // pred_check
        _
      $region30: #{tpu_custom_call.1} parent=5 // pred_check_branch
        %207 = sbr.rel (%p204) target = $region32
      $region31: #{tpu_custom_call.1} parent=5 // pred_region
        %s208 = ssub.s32 %s15, 1
        %s209 = sand.u32 %s51, 1
        %s210 = scalar_lea.sflag [#allocation3], %s209
        %s211 = sand.u32 %s51, 1
        %s212 = smul.addr %s211, 4
        %s213 = scalar_lea.vmem [#allocation2], %s212
        // Predicated region
        $region33: #{tpu_custom_call.1} parent=31 // pred_check
          %p214 = pneg %p64
        $region34: #{tpu_custom_call.1} parent=31 // pred_check_branch
          %216 = sbr.rel (%p214) target = $region36
        $region35: #{tpu_custom_call.1} parent=31 // pred_region
          %218 = dma.done %s210, 64
        $region36: #{tpu_custom_call.1} parent=31 // pred_fallthru
          _
        %s219 = sand.u32 %s51, 1
        %s220 = scalar_lea.sflag [#allocation3], %s219
        %s221 = sand.u32 %s51, 1
        %s222 = smul.addr %s221, 4
        %s223 = scalar_lea.vmem [#allocation2], %s222
        %p224 = pneg %p64
        %p225 = pneg %p61
        %p226 = scmp.lt.s32.totalorder %s25, 0
        %s227 = scalar_select %p226, %s25, 0
        %s228 = smul.addr %s227, 4
        %s229 = scalar_lea.vmem %s1, %s228
        %p230 = pneg %p90
        %p231 = pneg %p87
        %p232 = scmp.lt.s32.totalorder %s25, 0
        %s233 = scalar_select %p232, %s25, 0
        %s234 = smul.addr %s233, 4
        %s235 = scalar_lea.vmem %s2, %s234
        %p236 = pneg %p116
        %p237 = pneg %p113
        %p238 = pneg %p146
        %p239 = pneg %p143
        %s240 = sand.u32 %s133, 1
        %s241 = scalar_lea.sflag [#allocation4], %s240
        %s242 = sand.u32 %s133, 1
        %s243 = smul.addr %s242, 4
        %s244 = scalar_lea.vmem [#allocation5], %s243
        %p245 = scmp.lt.s32.totalorder %s25, 0
        %s246 = scalar_select %p245, %s25, 0
        %s247 = smul.addr %s246, 4
        %s248 = scalar_lea.vmem %s1, %s247
        %p249 = scmp.lt.s32.totalorder %s25, 0
        %s250 = scalar_select %p249, %s25, 0
        %s251 = smul.addr %s250, 4
        %s252 = scalar_lea.vmem %s2, %s251
        %v253 = vld [vmem:[%s213] sm:$0xf]
        %v254 = vld [vmem:[%s248] sm:$0xf]
        %v255 = vld [vmem:[%s252] sm:$0xf]
        %257 = vset.pattern.permute.xlu0 0
        %258 = vperm.xlu0 %257, %v254
        %v259 = vpop.permute.xlu0 %258
        %v261 = vmul.f32 %v253, %v259
        %263 = vset.pattern.permute.xlu0 0
        %264 = vperm.xlu0 %263, %v255
        %v265 = vpop.permute.xlu0 %264
        %v267 = vadd.f32 %v261, %v265
        %268 = vst [vmem:[%s244] sm:$0xf] %v267
        %s269 = sand.u32 %s133, 1
        %s270 = scalar_lea.sflag [#allocation4], %s269
        %s271 = sand.u32 %s133, 1
        %s272 = smul.addr %s271, 4
        %s273 = scalar_lea.vmem [#allocation5], %s272
        // Predicated region
        $region37: #{tpu_custom_call.1} parent=31 // pred_check
          %p274 = pneg %p143
        $region38: #{tpu_custom_call.1} parent=31 // pred_check_branch
          %276 = sbr.rel (%p274) target = $region40
        $region39: #{tpu_custom_call.1} parent=31 // pred_region
          %278 = vsyncadd %s270, 0
          %s279 = smul.addr %s25, 2
          %s280 = sadd.s32 %s26, %s279
          %s281 = smul.addr %s27, 2
          %s282 = sadd.s32 %s280, %s281
          %s283 = smul.addr %s282, 4
          %s284 = scalar_lea.hbm %s3, %s283
          %s286 = sshll.u32 %s273, 4
          %s287 = int_to_ptr.vmem [resolvable:$true] %s286
          %s288 = sshll.u32 %s284, 4
          %s289 = int_to_ptr.hbm [resolvable:$true] %s288
          %291 = dma.vmem_to_hbm [thread:$0]  %s287, 64, %s289, %s270
        $region40: #{tpu_custom_call.1} parent=31 // pred_fallthru
          _
      $region32: #{tpu_custom_call.1} parent=5 // pred_fallthru
        _
      %p292 = scmp.le.s32.totalorder 2, %s15
      // Predicated region
      $region41: #{tpu_custom_call.1} parent=5 // pred_check
        %p293 = pneg %p292
      $region42: #{tpu_custom_call.1} parent=5 // pred_check_branch
        %295 = sbr.rel (%p293) target = $region44
      $region43: #{tpu_custom_call.1} parent=5 // pred_region
        %s296 = ssub.s32 %s15, 2
        // Predicated region
        $region45: #{tpu_custom_call.1} parent=43 // pred_check
          %p297 = pneg %p149
        $region46: #{tpu_custom_call.1} parent=43 // pred_check_branch
          %299 = sbr.rel (%p297) target = $region48
        $region47: #{tpu_custom_call.1} parent=43 // pred_region
          %s300 = sand.u32 %s134, 1
          %s301 = scalar_lea.sflag [#allocation4], %s300
          %s302 = sand.u32 %s134, 1
          %s303 = smul.addr %s302, 4
          %s304 = scalar_lea.vmem [#allocation5], %s303
          %306 = dma.done %s301, 64
        $region48: #{tpu_custom_call.1} parent=43 // pred_fallthru
          _
      $region44: #{tpu_custom_call.1} parent=5 // pred_fallthru
        _
    $region6: #{tpu_custom_call.1} parent=1 // loop_footer
      %s19 = sadd.s32 1, %s15
    $region7: #{tpu_custom_call.1} parent=1 // loop_footer_branch
      %14 = sbr.rel target = $region3
    $region8: #{tpu_custom_call.1} parent=1 // loop_exit
      _
    %307 = vsyncpa [#allocation3], 1
    %s308 = scalar_lea.sflag [#allocation3], 1
    %309 = vsyncpa %s308, 1
    %310 = vsyncpa [#allocation4], 1
    %s311 = scalar_lea.sflag [#allocation4], 1
    %312 = vsyncpa %s311, 1

</llo_original>
